<compile_context>
chip_gen: v6e
topology: v6e:2x2x1
jax: 0.10.0
libtpu: 0.0.40
codegen_flags: <defaults>
</compile_context>

<pallas_src>
import jax
import jax.numpy as jnp
from jax.experimental import pallas as pl
from jax.experimental.pallas import tpu as pltpu


def _sac_critic_kernel(x_ref, w1_ref, w2_ref, bias_ref, out_ref):
    h2 = w1_ref.shape[1]                      # 2 * hidden_dim (static)

    x = x_ref[...]                            # [TB, R]
    bias = bias_ref[...]                      # [1, 2H + 2]
    b1 = bias[:, :h2]                         # [1, 2H]
    b2 = bias[:, h2:]                         # [1, 2]

    # Layer 1 (both heads fused): [TB, R] @ [R, 2H] + b1, ReLU.
    h = jnp.dot(x, w1_ref[...], preferred_element_type=jnp.float32) + b1
    h = jnp.maximum(h, 0.0)                   # [TB, 2H]

    # Layer 2 (both heads fused): block-diagonal [2H, 2] so column 0 only sees
    # head-1 activations and column 1 only head-2 activations.
    q = jnp.dot(h, w2_ref[...], preferred_element_type=jnp.float32) + b2  # [TB, 2]

    # min(Q1, Q2) as a lane reduction.
    out_ref[...] = jnp.min(q, axis=-1, keepdims=True)  # [TB, 1]


def pack_params(params):
    """One-time repacking of torch-layout params into the fused kernel layout.

    Input layout (as produced by init_params / transposed nn.Linear weights):
      w1_*: [repr_dim, H], b1_*: [1, H], w2_*: [H, 1], b2_*: [1, 1]
    """
    w1_q1, w1_q2 = params["w1_q1"], params["w1_q2"]
    b1_q1, b1_q2 = params["b1_q1"], params["b1_q2"]
    w2_q1, w2_q2 = params["w2_q1"], params["w2_q2"]
    b2_q1, b2_q2 = params["b2_q1"], params["b2_q2"]

    H = w1_q1.shape[1]

    w1 = jnp.concatenate([w1_q1, w1_q2], axis=1).astype(jnp.float32)   # [R, 2H]

    w2 = jnp.zeros((2 * H, 2), jnp.float32)                            # [2H, 2]
    w2 = w2.at[:H, 0:1].set(w2_q1.astype(jnp.float32))
    w2 = w2.at[H:, 1:2].set(w2_q2.astype(jnp.float32))

    bias = jnp.concatenate(                                             # [1, 2H+2]
        [b1_q1, b1_q2, b2_q1, b2_q2], axis=1).astype(jnp.float32)

    return {"w1": w1, "w2": w2, "bias": bias}


def sac_critic_forward(obs, action, packed, *, block_b=512):
    """obs: [B, Do] f32, action: [B, Da] f32 -> min(Q1, Q2): [B, 1] f32."""
    B = obs.shape[0]
    x = jnp.concatenate([obs, action], axis=1)          # [B, R] (only per-call HLO)
    R = x.shape[1]

    w1, w2, bias = packed["w1"], packed["w2"], packed["bias"]
    assert w1.shape[0] == R, (
        f"repr_dim mismatch: weights expect {w1.shape[0]}, got obs+action = {R}")
    H2 = w1.shape[1]                                     # 2 * hidden_dim

    # Batch tile: whole batch if small, else 8-aligned blocks of block_b rows.
    if B <= block_b:
        tb = B
    else:
        tb = (block_b // 8) * 8
    grid = (pl.cdiv(B, tb),)

    return pl.pallas_call(
        _sac_critic_kernel,
        out_shape=jax.ShapeDtypeStruct((B, 1), jnp.float32),
        grid_spec=pltpu.PrefetchScalarGridSpec(
            num_scalar_prefetch=0,
            grid=grid,
            in_specs=[
                pl.BlockSpec((tb, R), lambda i: (i, 0)),        # x tiled over batch
                pl.BlockSpec((R, H2), lambda i: (0, 0)),        # w1 slab, resident
                pl.BlockSpec((H2, 2), lambda i: (0, 0)),        # block-diag w2, resident
                pl.BlockSpec((1, H2 + 2), lambda i: (0, 0)),    # packed biases, resident
            ],
            out_specs=pl.BlockSpec((tb, 1), lambda i: (i, 0)),
        ),
        compiler_params=pltpu.CompilerParams(
            dimension_semantics=("parallel",)),
    )(x, w1, w2, bias)


def init_params(key, repr_dim, hidden_dim):
    """Deterministic synthetic init (orthogonal weights, zero biases), with
    weights stored [in_features, out_features] (transposed vs. torch)."""
    ortho = jax.nn.initializers.orthogonal()
    k = jax.random.split(key, 4)
    return {
        # Q1
        "w1_q1": ortho(k[0], (repr_dim, hidden_dim), jnp.float32),
        "b1_q1": jnp.zeros((1, hidden_dim), jnp.float32),
        "w2_q1": ortho(k[1], (hidden_dim, 1), jnp.float32),
        "b2_q1": jnp.zeros((1, 1), jnp.float32),
        # Q2
        "w1_q2": ortho(k[2], (repr_dim, hidden_dim), jnp.float32),
        "b1_q2": jnp.zeros((1, hidden_dim), jnp.float32),
        "w2_q2": ortho(k[3], (hidden_dim, 1), jnp.float32),
        "b2_q2": jnp.zeros((1, 1), jnp.float32),
    }


def _reference(obs, action, p):
    x = jnp.concatenate([obs, action], axis=1)
    q1 = jnp.maximum(x @ p["w1_q1"] + p["b1_q1"], 0.0) @ p["w2_q1"] + p["b2_q1"]
    q2 = jnp.maximum(x @ p["w1_q2"] + p["b1_q2"], 0.0) @ p["w2_q2"] + p["b2_q2"]
    return jnp.minimum(q1, q2)


if __name__ == "__main__":
    # Small shapes implied by forward(): obs [B, Do], action [B, Da],
    # repr_dim == Do + Da (concatenated feature width).
    B, Do, Da, H = 8, 24, 8, 32
    repr_dim = Do + Da

    root = jax.random.PRNGKey(0)
    k_obs, k_act, k_par = jax.random.split(root, 3)
    obs = jax.random.normal(k_obs, (B, Do), jnp.float32)
    action = jax.random.normal(k_act, (B, Da), jnp.float32)
    params = init_params(k_par, repr_dim, H)
    packed = pack_params(params)          # one-time weight packing (not per call)

    out = sac_critic_forward(obs, action, packed)
    out = jax.block_until_ready(out)

    ref = _reference(obs, action, params)
    assert out.shape == (B, 1), out.shape
    assert jnp.allclose(out, ref, atol=1e-5, rtol=1e-5), (out, ref)
    print("KERNEL_OK")
</pallas_src>

<mosaic_0001>
module attributes {stable_mosaic.version = 11 : i64} {
  func.func @_sac_critic_kernel(%arg0: i32, %arg1: memref<8x32xf32, #tpu.memory_space<vmem>>, %arg2: memref<32x64xf32, #tpu.memory_space<vmem>>, %arg3: memref<64x2xf32, #tpu.memory_space<vmem>>, %arg4: memref<1x66xf32, #tpu.memory_space<vmem>>, %arg5: memref<8x1xf32, #tpu.memory_space<vmem>>) attributes {dimension_semantics = [#tpu.dimension_semantics<parallel>], iteration_bounds = array<i64: 1>, scalar_prefetch = 0 : i64, scratch_operands = 0 : i64, tpu.core_type = #tpu.core_type<tc>, window_params = [{transform_indices = @transform_0, window_bounds = array<i64: 8, 32>}, {pipeline_mode = #tpu.pipeline_mode<synchronous>, transform_indices = @transform_1, window_bounds = array<i64: 32, 64>}, {pipeline_mode = #tpu.pipeline_mode<synchronous>, transform_indices = @transform_2, window_bounds = array<i64: 64, 2>}, {pipeline_mode = #tpu.pipeline_mode<synchronous>, transform_indices = @transform_3, window_bounds = array<i64: 1, 66>}, {transform_indices = @transform_4, window_bounds = array<i64: 8, 1>}]} {
    %c0 = arith.constant 0 : index
    %c0_0 = arith.constant 0 : index
    %0 = vector.load %arg1[%c0, %c0_0] : memref<8x32xf32, #tpu.memory_space<vmem>>, vector<8x32xf32>
    %c0_1 = arith.constant 0 : index
    %c0_2 = arith.constant 0 : index
    %1 = vector.load %arg4[%c0_1, %c0_2] : memref<1x66xf32, #tpu.memory_space<vmem>>, vector<1x66xf32>
    %2 = vector.extract_strided_slice %1 {offsets = [0, 0], sizes = [1, 64], strides = [1, 1]} : vector<1x66xf32> to vector<1x64xf32>
    %3 = vector.extract_strided_slice %1 {offsets = [0, 64], sizes = [1, 2], strides = [1, 1]} : vector<1x66xf32> to vector<1x2xf32>
    %c0_3 = arith.constant 0 : index
    %c0_4 = arith.constant 0 : index
    %4 = vector.load %arg2[%c0_3, %c0_4] : memref<32x64xf32, #tpu.memory_space<vmem>>, vector<32x64xf32>
    %cst = arith.constant dense<0.000000e+00> : vector<8x64xf32>
    %5 = tpu.matmul %0, %4, %cst {dimension_numbers = #tpu.dot_dimension_numbers<[1], [0], [0], [1], [0, 0, 1, 1], [], []>} : vector<8x32xf32>, vector<32x64xf32>, vector<8x64xf32> -> vector<8x64xf32>
    %6 = vector.broadcast %2 : vector<1x64xf32> to vector<8x64xf32>
    %7 = arith.addf %5, %6 : vector<8x64xf32>
    %cst_5 = arith.constant 0.000000e+00 : f32
    %8 = vector.broadcast %cst_5 : f32 to vector<8x64xf32>
    %9 = arith.maximumf %7, %8 : vector<8x64xf32>
    %c0_6 = arith.constant 0 : index
    %c0_7 = arith.constant 0 : index
    %10 = vector.load %arg3[%c0_6, %c0_7] : memref<64x2xf32, #tpu.memory_space<vmem>>, vector<64x2xf32>
    %cst_8 = arith.constant dense<0.000000e+00> : vector<8x2xf32>
    %11 = tpu.matmul %9, %10, %cst_8 {dimension_numbers = #tpu.dot_dimension_numbers<[1], [0], [0], [1], [0, 0, 1, 1], [], []>} : vector<8x64xf32>, vector<64x2xf32>, vector<8x2xf32> -> vector<8x2xf32>
    %12 = vector.broadcast %3 : vector<1x2xf32> to vector<8x2xf32>
    %13 = arith.addf %11, %12 : vector<8x2xf32>
    %cst_9 = arith.constant dense<0x7F800000> : vector<8xf32>
    %14 = vector.multi_reduction <minimumf>, %13, %cst_9 [1] : vector<8x2xf32> to vector<8xf32>
    %15 = vector.shape_cast %14 : vector<8xf32> to vector<8x1xf32>
    %c0_10 = arith.constant 0 : index
    %c0_11 = arith.constant 0 : index
    %16 = vector.load %arg5[%c0_10, %c0_11] : memref<8x1xf32, #tpu.memory_space<vmem>>, vector<8x1xf32>
    tpu.vector_store %arg5[%c0_10, %c0_11], %15 {strides = array<i32>} : memref<8x1xf32, #tpu.memory_space<vmem>>, vector<8x1xf32>,
    return
  }
  func.func @transform_0(%arg0: i32) -> (i32, i32) {
    %c0_i32 = arith.constant 0 : i32
    %c0_i32_0 = arith.constant 0 : i32
    return %arg0, %c0_i32 : i32, i32
  }
  func.func @transform_1(%arg0: i32) -> (i32, i32) {
    %c0_i32 = arith.constant 0 : i32
    %c0_i32_0 = arith.constant 0 : i32
    %c0_i32_1 = arith.constant 0 : i32
    return %c0_i32, %c0_i32_0 : i32, i32
  }
  func.func @transform_2(%arg0: i32) -> (i32, i32) {
    %c0_i32 = arith.constant 0 : i32
    %c0_i32_0 = arith.constant 0 : i32
    %c0_i32_1 = arith.constant 0 : i32
    return %c0_i32, %c0_i32_0 : i32, i32
  }
  func.func @transform_3(%arg0: i32) -> (i32, i32) {
    %c0_i32 = arith.constant 0 : i32
    %c0_i32_0 = arith.constant 0 : i32
    %c0_i32_1 = arith.constant 0 : i32
    return %c0_i32, %c0_i32_0 : i32, i32
  }
  func.func @transform_4(%arg0: i32) -> (i32, i32) {
    %c0_i32 = arith.constant 0 : i32
    %c0_i32_0 = arith.constant 0 : i32
    return %arg0, %c0_i32 : i32, i32
  }
}

</mosaic_0001>

<llo_original>
// kernel: tpu_custom_call.1
$region0: #{tpu_custom_call.1}
  #allocation0 [shape = 'u32[]', space=smem, size = 0x4, offset = 0x4, fixed_abs, tag = 'smem constant byte address 0x4 - core index']
  #allocation1 [shape = 'u32[144,128]{1,0:T(1,128)}', space=vmem, size = 0x12000, scoped, tag = 'internal scratch']
  %s0 = inlined_call_operand.vmem [shape: f32[8,32], index: 0, kind: input, shape index: {}]
  %s1 = inlined_call_operand.vmem [shape: f32[32,64], index: 1, kind: input, shape index: {}]
  %s2 = inlined_call_operand.vmem [shape: f32[64,2], index: 2, kind: input, shape index: {}]
  %s3 = inlined_call_operand.vmem [shape: f32[1,66], index: 3, kind: input, shape index: {}]
  %s4 = inlined_call_operand.vmem [shape: f32[8,1], index: 4, kind: output, shape index: {}]
  %s5 = sld [smem:[#allocation0]]
  $region26: #{tpu_custom_call.1} parent=0
    _
  %s7 = ssub.s32 1, %s5
  %s8 = scalar_select 0, %s7, %s5
  // Predicated region
  $region2: #{tpu_custom_call.1} parent=0 // pred_check
    _
  $region3: #{tpu_custom_call.1} parent=0 // pred_check_branch
    %10 = sbr.rel (0) target = $region5
  $region4: #{tpu_custom_call.1} parent=0 // pred_region
    _
  $region5: #{tpu_custom_call.1} parent=0 // pred_fallthru
    _
  // Predicated region
  $region6: #{tpu_custom_call.1} parent=0 // pred_check
    _
  $region7: #{tpu_custom_call.1} parent=0 // pred_check_branch
    %12 = sbr.rel (0) target = $region9
  $region8: #{tpu_custom_call.1} parent=0 // pred_region
    _
  $region9: #{tpu_custom_call.1} parent=0 // pred_fallthru
    _
  // Predicated region
  $region10: #{tpu_custom_call.1} parent=0 // pred_check
    _
  $region11: #{tpu_custom_call.1} parent=0 // pred_check_branch
    %14 = sbr.rel (0) target = $region13
  $region12: #{tpu_custom_call.1} parent=0 // pred_region
    _
  $region13: #{tpu_custom_call.1} parent=0 // pred_fallthru
    _
  // Predicated region
  $region14: #{tpu_custom_call.1} parent=0 // pred_check
    _
  $region15: #{tpu_custom_call.1} parent=0 // pred_check_branch
    %16 = sbr.rel (0) target = $region17
  $region16: #{tpu_custom_call.1} parent=0 // pred_region
    _
  $region17: #{tpu_custom_call.1} parent=0 // pred_fallthru
    _
  %v17 = vld [vmem:[%s0] sm:$0xff]
  %v18 = vld [vmem:[%s3] sm:$0x1]
  %v19 = vld [vmem:[%s1] sm:$0xff]
  %v20 = vld [vmem:[%s1 + $0x8] sm:$0xff]
  %v21 = vld [vmem:[%s1 + $0x10] sm:$0xff]
  %v22 = vld [vmem:[%s1 + $0x18] sm:$0xff]
  %v24 = vlaneseq
  %v25 = vshrl.u32 %v24, 7
  %v26 = vsub.s32 0, %v25
  %v27 = vrot.slane %v18, %v26
  %vm29 = vcmask 261120
  %v31 = vsel %vm29, %v17, 0
  %33 = vmatprep.subr.mxu0 0.0
  %34 = vmatpush1.msra.mxu0 0.0
  %35 = vmatprep.subr.mxu0 0.0
  %36 = vmatpush1.msra.mxu0 0.0
  %37 = vmatprep.subr.mxu0 0.0
  %38 = vmatpush1.msra.mxu0 0.0
  %39 = vmatprep.subr.mxu0 0.0
  %40 = vmatpush1.msra.mxu0 0.0
  %41 = vmatprep.subr.mxu0 0.0
  %42 = vmatpush1.msra.mxu0 0.0
  %43 = vmatprep.subr.mxu0 0.0
  %44 = vmatpush1.msra.mxu0 0.0
  %45 = vmatprep.subr.mxu0 0.0
  %46 = vmatpush1.msra.mxu0 0.0
  %47 = vmatprep.subr.mxu0 0.0
  %48 = vmatpush1.msra.mxu0 0.0
  %49 = vmatprep.subr.mxu0 0.0
  %50 = vmatpush1.msra.mxu0 0.0
  %51 = vmatprep.subr.mxu0 0.0
  %52 = vmatpush1.msra.mxu0 0.0
  %53 = vmatprep.subr.mxu0 0.0
  %54 = vmatpush1.msra.mxu0 0.0
  %55 = vmatprep.subr.mxu0 0.0
  %56 = vmatpush1.msra.mxu0 0.0
  %57 = vmatprep.subr.mxu0 0.0
  %58 = vmatpush1.msra.mxu0 %v22
  %59 = vmatprep.subr.mxu0 0.0
  %60 = vmatpush1.msra.mxu0 %v21
  %61 = vmatprep.subr.mxu0 0.0
  %62 = vmatpush1.msra.mxu0 %v20
  %63 = vmatprep.subr.mxu0 0.0
  %64 = vmatpush1.msra.mxu0 %v19
  %65 = vmatprep.subr.mxu0 0.0
  %66 = vmatpush2.msra.mxu0 0.0
  %67 = vmatprep.subr.mxu0 0.0
  %68 = vmatpush2.msra.mxu0 0.0
  %69 = vmatprep.subr.mxu0 0.0
  %70 = vmatpush2.msra.mxu0 0.0
  %71 = vmatprep.subr.mxu0 0.0
  %72 = vmatpush2.msra.mxu0 0.0
  %73 = vmatprep.subr.mxu0 0.0
  %74 = vmatpush2.msra.mxu0 0.0
  %75 = vmatprep.subr.mxu0 0.0
  %76 = vmatpush2.msra.mxu0 0.0
  %77 = vmatprep.subr.mxu0 0.0
  %78 = vmatpush2.msra.mxu0 0.0
  %79 = vmatprep.subr.mxu0 0.0
  %80 = vmatpush2.msra.mxu0 0.0
  %81 = vmatprep.subr.mxu0 0.0
  %82 = vmatpush2.msra.mxu0 0.0
  %83 = vmatprep.subr.mxu0 0.0
  %84 = vmatpush2.msra.mxu0 0.0
  %85 = vmatprep.subr.mxu0 0.0
  %86 = vmatpush2.msra.mxu0 0.0
  %87 = vmatprep.subr.mxu0 0.0
  %88 = vmatpush2.msra.mxu0 0.0
  %89 = vmatprep.subr.mxu0 0.0
  %90 = vmatpush2.msra.mxu0 0.0
  %91 = vmatprep.subr.mxu0 0.0
  %92 = vmatpush2.msra.mxu0 0.0
  %93 = vmatprep.subr.mxu0 0.0
  %94 = vmatpush2.msra.mxu0 0.0
  %95 = vmatprep.subr.mxu0 0.0
  %96 = vmatpush2.msra.mxu0 0.0
  %97 = vmatprep.mubr.f32.mxu0 0.0
  %98 = vmatmul.mubr.f32.gmra.mxu0 %v31
  %v99 = vpop.f32.mrf.mxu0
  %v100 = vadd.f32 %v27, %v99
  %v101 = vpop.f32.mrf.mxu0
  %102 = vdwg.mxu0
  %v103 = vmax.f32 %v100, 0.0
  %v104 = vld [vmem:[%s2] sm:$0xff]
  %v105 = vld [vmem:[%s2 + $0x8] sm:$0xff]
  %v106 = vld [vmem:[%s2 + $0x10] sm:$0xff]
  %v107 = vld [vmem:[%s2 + $0x18] sm:$0xff]
  %v108 = vld [vmem:[%s2 + $0x20] sm:$0xff]
  %v109 = vld [vmem:[%s2 + $0x28] sm:$0xff]
  %v110 = vld [vmem:[%s2 + $0x30] sm:$0xff]
  %v111 = vld [vmem:[%s2 + $0x38] sm:$0xff]
  %112 = vrot.lane.b32.xlu0 %v27, 64
  %v113 = vpop.permute.xlu0 %112
  %vm115 = vcmask 523264
  %v117 = vsel %vm115, %v103, 0
  %119 = vmatprep.subr.mxu0 0.0
  %120 = vmatpush1.msra.mxu0 0.0
  %121 = vmatprep.subr.mxu0 0.0
  %122 = vmatpush1.msra.mxu0 0.0
  %123 = vmatprep.subr.mxu0 0.0
  %124 = vmatpush1.msra.mxu0 0.0
  %125 = vmatprep.subr.mxu0 0.0
  %126 = vmatpush1.msra.mxu0 0.0
  %127 = vmatprep.subr.mxu0 0.0
  %128 = vmatpush1.msra.mxu0 0.0
  %129 = vmatprep.subr.mxu0 0.0
  %130 = vmatpush1.msra.mxu0 0.0
  %131 = vmatprep.subr.mxu0 0.0
  %132 = vmatpush1.msra.mxu0 0.0
  %133 = vmatprep.subr.mxu0 0.0
  %134 = vmatpush1.msra.mxu0 0.0
  %135 = vmatprep.subr.mxu0 0.0
  %136 = vmatpush1.msra.mxu0 %v111
  %137 = vmatprep.subr.mxu0 0.0
  %138 = vmatpush1.msra.mxu0 %v110
  %139 = vmatprep.subr.mxu0 0.0
  %140 = vmatpush1.msra.mxu0 %v109
  %141 = vmatprep.subr.mxu0 0.0
  %142 = vmatpush1.msra.mxu0 %v108
  %143 = vmatprep.subr.mxu0 0.0
  %144 = vmatpush1.msra.mxu0 %v107
  %145 = vmatprep.subr.mxu0 0.0
  %146 = vmatpush1.msra.mxu0 %v106
  %147 = vmatprep.subr.mxu0 0.0
  %148 = vmatpush1.msra.mxu0 %v105
  %149 = vmatprep.subr.mxu0 0.0
  %150 = vmatpush1.msra.mxu0 %v104
  %151 = vmatprep.subr.mxu0 0.0
  %152 = vmatpush2.msra.mxu0 0.0
  %153 = vmatprep.subr.mxu0 0.0
  %154 = vmatpush2.msra.mxu0 0.0
  %155 = vmatprep.subr.mxu0 0.0
  %156 = vmatpush2.msra.mxu0 0.0
  %157 = vmatprep.subr.mxu0 0.0
  %158 = vmatpush2.msra.mxu0 0.0
  %159 = vmatprep.subr.mxu0 0.0
  %160 = vmatpush2.msra.mxu0 0.0
  %161 = vmatprep.subr.mxu0 0.0
  %162 = vmatpush2.msra.mxu0 0.0
  %163 = vmatprep.subr.mxu0 0.0
  %164 = vmatpush2.msra.mxu0 0.0
  %165 = vmatprep.subr.mxu0 0.0
  %166 = vmatpush2.msra.mxu0 0.0
  %167 = vmatprep.subr.mxu0 0.0
  %168 = vmatpush2.msra.mxu0 0.0
  %169 = vmatprep.subr.mxu0 0.0
  %170 = vmatpush2.msra.mxu0 0.0
  %171 = vmatprep.subr.mxu0 0.0
  %172 = vmatpush2.msra.mxu0 0.0
  %173 = vmatprep.subr.mxu0 0.0
  %174 = vmatpush2.msra.mxu0 0.0
  %175 = vmatprep.subr.mxu0 0.0
  %176 = vmatpush2.msra.mxu0 0.0
  %177 = vmatprep.subr.mxu0 0.0
  %178 = vmatpush2.msra.mxu0 0.0
  %179 = vmatprep.subr.mxu0 0.0
  %180 = vmatpush2.msra.mxu0 0.0
  %181 = vmatprep.subr.mxu0 0.0
  %182 = vmatpush2.msra.mxu0 0.0
  %183 = vmatprep.mubr.f32.mxu0 0.0
  %184 = vmatmul.mubr.f32.gmra.mxu0 %v117
  %v185 = vpop.f32.mrf.mxu0
  %v186 = vadd.f32 %v113, %v185
  %v187 = vpop.f32.mrf.mxu0
  %188 = vdwg.mxu0
  %vm189 = vcmask 15360
  %v190 = vsel %vm189, %v186, inf
  %191 = vmin.xlane.f32.xlu0 %v190
  %v192 = vpop.xlane.xlu0 %191
  %vm193 = vcmask 7168
  %194 = vst.msk [vmem:[%s4] sm:$0xff] %vm193, %v192
  // Predicated region
  $region18: #{tpu_custom_call.1} parent=0 // pred_check
    _
  $region19: #{tpu_custom_call.1} parent=0 // pred_check_branch
    %196 = sbr.rel (0) target = $region21
  $region20: #{tpu_custom_call.1} parent=0 // pred_region
    _
  $region21: #{tpu_custom_call.1} parent=0 // pred_fallthru
    _
  // Predicated region
  $region22: #{tpu_custom_call.1} parent=0 // pred_check
    _
  $region23: #{tpu_custom_call.1} parent=0 // pred_check_branch
    %198 = sbr.rel (0) target = $region25
  $region24: #{tpu_custom_call.1} parent=0 // pred_region
    _
  $region25: #{tpu_custom_call.1} parent=0 // pred_fallthru
    _

</llo_original>
